<compile_context>
chip_gen: v7x
topology: tpu7x:2x2x1
jax: 0.10.0
libtpu: 0.0.40
codegen_flags: <defaults>
</compile_context>

<pallas_src>
import functools

import jax
import jax.numpy as jnp
from jax.experimental import pallas as pl
from jax.experimental.pallas import tpu as pltpu

EPS = 1e-5  # torch.nn.LayerNorm default
_MiB = 1024 * 1024
_W_RESIDENT_BYTES = 12 * _MiB  # keep (D, D) bf16 weight resident while <= this


def _round_up(x, m):
    return (x + m - 1) // m * m


def _cdiv(a, b):
    return (a + b - 1) // b


def _vmem_capacity_bytes():
    try:
        return int(pltpu.get_tpu_info().vmem_capacity_bytes)
    except Exception:
        return 64 * _MiB  # v7x-conservative fallback


def _layernorm_f32(x_f32, gamma, beta):
    mean = jnp.mean(x_f32, axis=-1, keepdims=True)
    xc = x_f32 - mean
    var = jnp.mean(xc * xc, axis=-1, keepdims=True)  # biased variance (torch)
    inv = jax.lax.rsqrt(var + EPS)
    return xc * inv * gamma + beta


def _prenorm_resident_kernel(x_ref, gamma_ref, beta_ref, w_ref, b_ref, o_ref):
    """Grid = (row tiles,).  Full (D, D) weight resident in VMEM.

    x_ref     : (tm, D)  input rows
    gamma_ref : (1, D)   LayerNorm weight (f32)
    beta_ref  : (1, D)   LayerNorm bias   (f32)
    w_ref     : (D, D)   Linear weight (bf16, resident)
    b_ref     : (1, D)   Linear bias (f32)
    o_ref     : (tm, D)  output tile
    """
    x = x_ref[...].astype(jnp.float32)
    normed = _layernorm_f32(x, gamma_ref[...], beta_ref[...])
    # Straight from registers into the MXU: bf16 x bf16 -> f32 accumulate.
    out = jnp.dot(normed.astype(w_ref.dtype), w_ref[...],
                  preferred_element_type=jnp.float32)
    o_ref[...] = (out + b_ref[...]).astype(o_ref.dtype)


def _prenorm_tiled_kernel(x_ref, gamma_ref, beta_ref, w_ref, b_ref, o_ref,
                          normed_ref):
    """Grid = (row tiles, output-column tiles) — only for very large D.

    normed_ref: (tm, D) bf16 scratch; LayerNorm result computed once per row
    tile (j == 0) and reused across all column tiles.  Relies on j being an
    inner, sequentially iterated ("arbitrary") axis.
    """
    @pl.when(pl.program_id(1) == 0)
    def _():
        x = x_ref[...].astype(jnp.float32)
        normed = _layernorm_f32(x, gamma_ref[...], beta_ref[...])
        normed_ref[...] = normed.astype(normed_ref.dtype)

    out = jnp.dot(normed_ref[...], w_ref[...], preferred_element_type=jnp.float32)
    o_ref[...] = (out + b_ref[...]).astype(o_ref.dtype)


@functools.partial(jax.jit, static_argnames=("out_dtype",))
def prenorm_linear(x, gamma, beta, w, b, *, out_dtype=None):
    """x: (B, S, D) -> (B, S, D).  PreNorm with fn = Linear(D, D)."""
    B, S, D = x.shape
    rows = B * S
    x_elt = jnp.dtype(x.dtype).itemsize
    out_dtype = jnp.dtype(out_dtype) if out_dtype is not None else jnp.dtype(x.dtype)
    out_elt = out_dtype.itemsize

    vmem_cap = _vmem_capacity_bytes()
    budget = min(int(0.5 * vmem_cap), 96 * _MiB)

    w_bytes = D * D * 2  # bf16 weight
    resident = w_bytes <= _W_RESIDENT_BYTES

    # Output-column tile (only used on the non-resident path).
    tn = D
    if not resident:
        tn = None
        for cand in (512, 256, 128):  # prefer 256-multiples (v6e/v7x MXU width)
            if D % cand == 0:
                tn = cand
                break
        if tn is None:  # awkward D: fall back to resident anyway
            tn = D
            resident = True

    def footprint(tm):
        if resident:
            return (2 * tm * D * x_elt          # double-buffered x tiles
                    + 2 * tm * D * out_elt      # double-buffered out tiles
                    + 2 * w_bytes               # resident bf16 W (conservative 2x)
                    + 3 * tm * D * 4            # f32 LN temporaries
                    + 8 * D * 4)                # small params
        return (3 * tm * D * x_elt              # Buffered(3) x tiles
                + 2 * D * tn * 2                # bf16 W column tiles
                + 2 * tm * tn * out_elt         # out tiles
                + tm * D * 2                    # bf16 normed scratch
                + 3 * tm * D * 4                # f32 LN temporaries
                + 8 * D * 4)

    # Row tile: as large as the VMEM budget allows (bigger on v5e/v6e, smaller
    # on v7x), 16-aligned for bf16 sublane packing.
    ALIGN = 16
    tm_target = 1024
    while tm_target > 64 and footprint(tm_target) > budget:
        tm_target //= 2

    rows_a = _round_up(rows, ALIGN)
    ntiles = max(1, _cdiv(rows_a, tm_target))
    if ntiles == 1 and rows_a >= 2 * ALIGN:
        ntiles = 2  # give both v7x TensorCores a row tile; negligible cost on 1-TC chips
    tm_eff = _round_up(_cdiv(rows_a, ntiles), ALIGN)
    rows_p = tm_eff * ntiles

    fp = footprint(tm_eff)
    vmem_limit = int(min(max(int(1.3 * fp), 16 * _MiB), int(0.9 * vmem_cap)))

    x2 = x.reshape(rows, D)
    if rows_p != rows:
        # Zero rows normalize to beta and produce finite garbage that is sliced
        # off below; valid rows are unaffected (LayerNorm is per-row).
        x2 = jnp.pad(x2, ((0, rows_p - rows), (0, 0)))

    gamma2 = gamma.reshape(1, D).astype(jnp.float32)
    beta2 = beta.reshape(1, D).astype(jnp.float32)
    b2 = b.reshape(1, D).astype(jnp.float32)
    w_bf16 = w.astype(jnp.bfloat16)  # MXU-native operand dtype

    if resident:
        cost = pl.CostEstimate(
            flops=2 * rows_p * D * D,
            transcendentals=rows_p,  # one rsqrt per row
            bytes_accessed=int(rows_p * D * (x_elt + out_elt)  # x + out
                               + w_bytes                       # W fetched once
                               + 3 * D * 4),                   # gamma/beta/bias
        )
        out2 = pl.pallas_call(
            _prenorm_resident_kernel,
            out_shape=jax.ShapeDtypeStruct((rows_p, D), out_dtype),
            grid_spec=pltpu.PrefetchScalarGridSpec(
                num_scalar_prefetch=0,
                grid=(ntiles,),
                in_specs=[
                    pl.BlockSpec((tm_eff, D), lambda i: (i, 0)),  # x rows
                    pl.BlockSpec((1, D), lambda i: (0, 0)),       # gamma
                    pl.BlockSpec((1, D), lambda i: (0, 0)),       # beta
                    pl.BlockSpec((D, D), lambda i: (0, 0)),       # W (resident)
                    pl.BlockSpec((1, D), lambda i: (0, 0)),       # bias
                ],
                out_specs=pl.BlockSpec((tm_eff, D), lambda i: (i, 0)),
            ),
            compiler_params=pltpu.CompilerParams(
                dimension_semantics=("parallel",),
                vmem_limit_bytes=vmem_limit,
            ),
            cost_estimate=cost,
        )(x2, gamma2, beta2, w_bf16, b2)
    else:
        grid = (ntiles, D // tn)
        cost = pl.CostEstimate(
            flops=2 * rows_p * D * D,
            transcendentals=rows_p,
            bytes_accessed=int(rows_p * D * (x_elt + out_elt)
                               + ntiles * w_bytes   # W re-streamed per row tile
                               + 3 * D * 4),
        )
        out2 = pl.pallas_call(
            _prenorm_tiled_kernel,
            out_shape=jax.ShapeDtypeStruct((rows_p, D), out_dtype),
            grid_spec=pltpu.PrefetchScalarGridSpec(
                num_scalar_prefetch=0,
                grid=grid,
                in_specs=[
                    # Deeper buffering so the next row tile's x DMA hides under
                    # several column-tile matmuls, not just the last one.
                    pl.BlockSpec((tm_eff, D), lambda i, j: (i, 0),
                                 pipeline_mode=pl.Buffered(3)),
                    pl.BlockSpec((1, D), lambda i, j: (0, 0)),
                    pl.BlockSpec((1, D), lambda i, j: (0, 0)),
                    pl.BlockSpec((D, tn), lambda i, j: (0, j)),
                    pl.BlockSpec((1, tn), lambda i, j: (0, j)),
                ],
                out_specs=pl.BlockSpec((tm_eff, tn), lambda i, j: (i, j)),
                scratch_shapes=[pltpu.VMEM((tm_eff, D), jnp.bfloat16)],
            ),
            compiler_params=pltpu.CompilerParams(
                dimension_semantics=("parallel", "arbitrary"),
                vmem_limit_bytes=vmem_limit,
            ),
            cost_estimate=cost,
        )(x2, gamma2, beta2, w_bf16, b2)

    if rows_p != rows:
        out2 = out2[:rows]
    return out2.reshape(B, S, D)


def reference(x, gamma, beta, w, b):
    mean = jnp.mean(x, axis=-1, keepdims=True)
    var = jnp.mean((x - mean) ** 2, axis=-1, keepdims=True)
    normed = (x - mean) / jnp.sqrt(var + EPS) * gamma + beta
    return normed @ w + b


if __name__ == "__main__":
    # TODO(synk): PreNorm's `fn` is an arbitrary callable; it is fused here as
    # the canonical ViT case Linear(dim, dim).
    D = 128
    key = jax.random.PRNGKey(0)
    kx, kg, kb, kw, kbb, kx2 = jax.random.split(key, 6)

    gamma = 1.0 + 0.1 * jax.random.normal(kg, (D,), dtype=jnp.float32)
    beta = 0.1 * jax.random.normal(kb, (D,), dtype=jnp.float32)
    w = jax.random.normal(kw, (D, D), dtype=jnp.float32) / jnp.sqrt(D)
    b = 0.1 * jax.random.normal(kbb, (D,), dtype=jnp.float32)

    # Case 1: divisible row count.
    x = jax.random.normal(kx, (2, 8, D), dtype=jnp.float32)
    out = jax.block_until_ready(prenorm_linear(x, gamma, beta, w, b))
    ref = reference(x, gamma, beta, w, b)
    assert out.shape == x.shape
    # bf16 matmul operands -> relaxed tolerance vs. the full-f32 reference.
    assert jnp.allclose(out, ref, atol=5e-2, rtol=5e-2), float(
        jnp.max(jnp.abs(out - ref))
    )

    # Case 2: ragged row count (exercises the padding path).
    x2 = jax.random.normal(kx2, (3, 5, D), dtype=jnp.float32)
    out2 = jax.block_until_ready(prenorm_linear(x2, gamma, beta, w, b))
    ref2 = reference(x2, gamma, beta, w, b)
    assert out2.shape == x2.shape
    assert jnp.allclose(out2, ref2, atol=5e-2, rtol=5e-2), float(
        jnp.max(jnp.abs(out2 - ref2))
    )

    print("KERNEL_OK")
</pallas_src>

<mosaic_0001>
module attributes {stable_mosaic.version = 11 : i64} {
  func.func @_prenorm_resident_kernel(%arg0: i32, %arg1: memref<16x128xf32, #tpu.memory_space<vmem>>, %arg2: memref<1x128xf32, #tpu.memory_space<vmem>>, %arg3: memref<1x128xf32, #tpu.memory_space<vmem>>, %arg4: memref<128x128xbf16, #tpu.memory_space<vmem>>, %arg5: memref<1x128xf32, #tpu.memory_space<vmem>>, %arg6: memref<16x128xf32, #tpu.memory_space<vmem>>) attributes {dimension_semantics = [#tpu.dimension_semantics<parallel>], iteration_bounds = array<i64: 1>, scalar_prefetch = 0 : i64, scratch_operands = 0 : i64, tpu.core_type = #tpu.core_type<tc>, window_params = [{transform_indices = @transform_0, window_bounds = array<i64: 16, 128>}, {pipeline_mode = #tpu.pipeline_mode<synchronous>, transform_indices = @transform_1, window_bounds = array<i64: 1, 128>}, {pipeline_mode = #tpu.pipeline_mode<synchronous>, transform_indices = @transform_2, window_bounds = array<i64: 1, 128>}, {pipeline_mode = #tpu.pipeline_mode<synchronous>, transform_indices = @transform_3, window_bounds = array<i64: 128, 128>}, {pipeline_mode = #tpu.pipeline_mode<synchronous>, transform_indices = @transform_4, window_bounds = array<i64: 1, 128>}, {transform_indices = @transform_5, window_bounds = array<i64: 16, 128>}]} {
    %c0 = arith.constant 0 : index
    %c0_0 = arith.constant 0 : index
    %0 = vector.load %arg1[%c0, %c0_0] : memref<16x128xf32, #tpu.memory_space<vmem>>, vector<16x128xf32>
    %c0_1 = arith.constant 0 : index
    %c0_2 = arith.constant 0 : index
    %1 = vector.load %arg2[%c0_1, %c0_2] : memref<1x128xf32, #tpu.memory_space<vmem>>, vector<1x128xf32>
    %c0_3 = arith.constant 0 : index
    %c0_4 = arith.constant 0 : index
    %2 = vector.load %arg3[%c0_3, %c0_4] : memref<1x128xf32, #tpu.memory_space<vmem>>, vector<1x128xf32>
    %cst = arith.constant dense<0.000000e+00> : vector<16xf32>
    %3 = vector.multi_reduction <add>, %0, %cst [1] : vector<16x128xf32> to vector<16xf32>
    %4 = vector.shape_cast %3 : vector<16xf32> to vector<16x1xf32>
    %cst_5 = arith.constant 1.280000e+02 : f32
    %5 = vector.broadcast %cst_5 : f32 to vector<16x1xf32>
    %6 = arith.divf %4, %5 : vector<16x1xf32>
    %7 = vector.broadcast %6 : vector<16x1xf32> to vector<16x128xf32>
    %8 = arith.subf %0, %7 : vector<16x128xf32>
    %9 = arith.mulf %8, %8 : vector<16x128xf32>
    %cst_6 = arith.constant dense<0.000000e+00> : vector<16xf32>
    %10 = vector.multi_reduction <add>, %9, %cst_6 [1] : vector<16x128xf32> to vector<16xf32>
    %11 = vector.shape_cast %10 : vector<16xf32> to vector<16x1xf32>
    %cst_7 = arith.constant 1.280000e+02 : f32
    %12 = vector.broadcast %cst_7 : f32 to vector<16x1xf32>
    %13 = arith.divf %11, %12 : vector<16x1xf32>
    %cst_8 = arith.constant 9.99999974E-6 : f32
    %14 = vector.broadcast %cst_8 : f32 to vector<16x1xf32>
    %15 = arith.addf %13, %14 : vector<16x1xf32>
    %16 = math.rsqrt %15 : vector<16x1xf32>
    %17 = vector.broadcast %16 : vector<16x1xf32> to vector<16x128xf32>
    %18 = arith.mulf %8, %17 : vector<16x128xf32>
    %19 = vector.broadcast %1 : vector<1x128xf32> to vector<16x128xf32>
    %20 = arith.mulf %18, %19 : vector<16x128xf32>
    %21 = vector.broadcast %2 : vector<1x128xf32> to vector<16x128xf32>
    %22 = arith.addf %20, %21 : vector<16x128xf32>
    %23 = arith.truncf %22 : vector<16x128xf32> to vector<16x128xbf16>
    %c0_9 = arith.constant 0 : index
    %c0_10 = arith.constant 0 : index
    %24 = vector.load %arg4[%c0_9, %c0_10] : memref<128x128xbf16, #tpu.memory_space<vmem>>, vector<128x128xbf16>
    %cst_11 = arith.constant dense<0.000000e+00> : vector<16x128xf32>
    %25 = tpu.matmul %23, %24, %cst_11 {dimension_numbers = #tpu.dot_dimension_numbers<[1], [0], [0], [1], [0, 0, 1, 1], [], []>} : vector<16x128xbf16>, vector<128x128xbf16>, vector<16x128xf32> -> vector<16x128xf32>
    %c0_12 = arith.constant 0 : index
    %c0_13 = arith.constant 0 : index
    %26 = vector.load %arg5[%c0_12, %c0_13] : memref<1x128xf32, #tpu.memory_space<vmem>>, vector<1x128xf32>
    %27 = vector.broadcast %26 : vector<1x128xf32> to vector<16x128xf32>
    %28 = arith.addf %25, %27 : vector<16x128xf32>
    %c0_14 = arith.constant 0 : index
    %c0_15 = arith.constant 0 : index
    %29 = vector.load %arg6[%c0_14, %c0_15] : memref<16x128xf32, #tpu.memory_space<vmem>>, vector<16x128xf32>
    tpu.vector_store %arg6[%c0_14, %c0_15], %28 {strides = array<i32>} : memref<16x128xf32, #tpu.memory_space<vmem>>, vector<16x128xf32>,
    return
  }
  func.func @transform_0(%arg0: i32) -> (i32, i32) {
    %c0_i32 = arith.constant 0 : i32
    %c0_i32_0 = arith.constant 0 : i32
    return %arg0, %c0_i32 : i32, i32
  }
  func.func @transform_1(%arg0: i32) -> (i32, i32) {
    %c0_i32 = arith.constant 0 : i32
    %c0_i32_0 = arith.constant 0 : i32
    %c0_i32_1 = arith.constant 0 : i32
    return %c0_i32, %c0_i32_0 : i32, i32
  }
  func.func @transform_2(%arg0: i32) -> (i32, i32) {
    %c0_i32 = arith.constant 0 : i32
    %c0_i32_0 = arith.constant 0 : i32
    %c0_i32_1 = arith.constant 0 : i32
    return %c0_i32, %c0_i32_0 : i32, i32
  }
  func.func @transform_3(%arg0: i32) -> (i32, i32) {
    %c0_i32 = arith.constant 0 : i32
    %c0_i32_0 = arith.constant 0 : i32
    %c0_i32_1 = arith.constant 0 : i32
    return %c0_i32, %c0_i32_0 : i32, i32
  }
  func.func @transform_4(%arg0: i32) -> (i32, i32) {
    %c0_i32 = arith.constant 0 : i32
    %c0_i32_0 = arith.constant 0 : i32
    %c0_i32_1 = arith.constant 0 : i32
    return %c0_i32, %c0_i32_0 : i32, i32
  }
  func.func @transform_5(%arg0: i32) -> (i32, i32) {
    %c0_i32 = arith.constant 0 : i32
    %c0_i32_0 = arith.constant 0 : i32
    return %arg0, %c0_i32 : i32, i32
  }
}

</mosaic_0001>

<llo_original>
// kernel: prenorm_linear.1
$region0: #{prenorm_linear.1}
  #allocation0 [shape = 'u32[]', space=smem, size = 0x4, offset = 0x4, fixed_abs, tag = 'smem constant byte address 0x4 - core index']
  #allocation1 [shape = 'u32[144,128]{1,0:T(1,128)}', space=vmem, size = 0x12000, scoped, tag = 'internal scratch']
  %s0 = inlined_call_operand.vmem [shape: f32[16,128], index: 0, kind: input, shape index: {}]
  %s1 = inlined_call_operand.vmem [shape: f32[1,128], index: 1, kind: input, shape index: {}]
  %s2 = inlined_call_operand.vmem [shape: f32[1,128], index: 2, kind: input, shape index: {}]
  %s3 = inlined_call_operand.vmem [shape: bf16[128,128], index: 3, kind: input, shape index: {}]
  %s4 = inlined_call_operand.vmem [shape: f32[1,128], index: 4, kind: input, shape index: {}]
  %s5 = inlined_call_operand.hbm [shape: f32[16,128], index: 5, kind: output, shape index: {}]
  %s6 = sld [smem:[#allocation0]]
  $region30: #{prenorm_linear.1} parent=0
    _
  %s8 = ssub.s32 1, %s6
  %s9 = scalar_select 0, %s8, %s6
  $region1: #{prenorm_linear.1} parent=0
    #allocation2 [shape = 'u8[8192]{0}', space=vmem, size = 0x2000, scoped, tag = 'output window, operand 0, single buffered']
    #allocation3 [shape = 's32[1]{0}', space=sflag, size = 0x4, scoped, tag = 'scoped memory for prenorm_linear.1']
    %10 = vsyncpa [#allocation3], 0
    // Predicated region
    $region2: #{prenorm_linear.1} parent=1 // pred_check
      _
    $region3: #{prenorm_linear.1} parent=1 // pred_check_branch
      %12 = sbr.rel (0) target = $region5
    $region4: #{prenorm_linear.1} parent=1 // pred_region
      _
    $region5: #{prenorm_linear.1} parent=1 // pred_fallthru
      _
    // Predicated region
    $region6: #{prenorm_linear.1} parent=1 // pred_check
      _
    $region7: #{prenorm_linear.1} parent=1 // pred_check_branch
      %14 = sbr.rel (0) target = $region9
    $region8: #{prenorm_linear.1} parent=1 // pred_region
      _
    $region9: #{prenorm_linear.1} parent=1 // pred_fallthru
      _
    // Predicated region
    $region10: #{prenorm_linear.1} parent=1 // pred_check
      _
    $region11: #{prenorm_linear.1} parent=1 // pred_check_branch
      %16 = sbr.rel (0) target = $region13
    $region12: #{prenorm_linear.1} parent=1 // pred_region
      _
    $region13: #{prenorm_linear.1} parent=1 // pred_fallthru
      _
    // Predicated region
    $region14: #{prenorm_linear.1} parent=1 // pred_check
      _
    $region15: #{prenorm_linear.1} parent=1 // pred_check_branch
      %18 = sbr.rel (0) target = $region17
    $region16: #{prenorm_linear.1} parent=1 // pred_region
      _
    $region17: #{prenorm_linear.1} parent=1 // pred_fallthru
      _
    // Predicated region
    $region18: #{prenorm_linear.1} parent=1 // pred_check
      _
    $region19: #{prenorm_linear.1} parent=1 // pred_check_branch
      %20 = sbr.rel (0) target = $region21
    $region20: #{prenorm_linear.1} parent=1 // pred_region
      _
    $region21: #{prenorm_linear.1} parent=1 // pred_fallthru
      _
    %v22 = vld [vmem:[%s0] sm:$0xff]
    %v23 = vld [vmem:[%s0 + $0x8] sm:$0xff]
    %v24 = vld [vmem:[%s1] sm:$0x1]
    %v25 = vld [vmem:[%s2] sm:$0x1]
    %26 = vadd.xlane.f32.xlu0 %v22
    %v27 = vpop.xlane.xlu0 %26
    %28 = vadd.xlane.f32.xlu0 %v23
    %v29 = vpop.xlane.xlu0 %28
    %v30 = vrcp.pop 128.0
    %v31 = vmul.f32 %v27, %v30
    %v32 = vmul.f32 %v29, %v30
    %v33 = vsub.f32 %v22, %v31
    %v34 = vsub.f32 %v23, %v32
    %v35 = vmul.f32 %v33, %v33
    %v36 = vmul.f32 %v34, %v34
    %37 = vadd.xlane.f32.xlu0 %v35
    %v38 = vpop.xlane.xlu0 %37
    %39 = vadd.xlane.f32.xlu0 %v36
    %v40 = vpop.xlane.xlu0 %39
    %v41 = vmul.f32 %v38, %v30
    %v42 = vmul.f32 %v40, %v30
    %v43 = vadd.f32 %v41, 1e-05
    %v44 = vadd.f32 %v42, 1e-05
    %v45 = vrsqrt.pop %v43
    %v46 = vrsqrt.pop %v44
    %v47 = vmul.f32 %v33, %v45
    %v48 = vmul.f32 %v34, %v46
    %v50 = vlaneseq
    %v51 = vshrl.u32 %v50, 7
    %v52 = vsub.s32 0, %v51
    %v53 = vrot.slane %v24, %v52
    %v55 = vmul.f32 %v47, %v53
    %v56 = vmul.f32 %v48, %v53
    %v58 = vlaneseq
    %v59 = vshrl.u32 %v58, 7
    %v60 = vsub.s32 0, %v59
    %v61 = vrot.slane %v25, %v60
    %v63 = vadd.f32 %v55, %v61
    %v64 = vadd.f32 %v56, %v61
    %v65 = vpack.c.bf16 %v64, %v63
    %v66 = vld [vmem:[%s3] sm:$0xf]
    %v67 = vld [vmem:[%s3 + $0x4] sm:$0xf]
    %v68 = vld [vmem:[%s3 + $0x8] sm:$0xf]
    %v69 = vld [vmem:[%s3 + $0xc] sm:$0xf]
    %v70 = vld [vmem:[%s3 + $0x10] sm:$0xf]
    %v71 = vld [vmem:[%s3 + $0x14] sm:$0xf]
    %v72 = vld [vmem:[%s3 + $0x18] sm:$0xf]
    %v73 = vld [vmem:[%s3 + $0x1c] sm:$0xf]
    %v74 = vld [vmem:[%s3 + $0x20] sm:$0xf]
    %v75 = vld [vmem:[%s3 + $0x24] sm:$0xf]
    %v76 = vld [vmem:[%s3 + $0x28] sm:$0xf]
    %v77 = vld [vmem:[%s3 + $0x2c] sm:$0xf]
    %v78 = vld [vmem:[%s3 + $0x30] sm:$0xf]
    %v79 = vld [vmem:[%s3 + $0x34] sm:$0xf]
    %v80 = vld [vmem:[%s3 + $0x38] sm:$0xf]
    %v81 = vld [vmem:[%s3 + $0x3c] sm:$0xf]
    %v82 = vld [vmem:[%s4] sm:$0x1]
    %v84 = vlaneseq
    %v85 = vshrl.u32 %v84, 7
    %v86 = vsub.s32 0, %v85
    %v87 = vrot.slane %v82, %v86
    %v105 = vunpack.c.l.b16 %v66
    %v106 = vunpack.c.l.b16 %v67
    %v107 = vunpack.c.l.b16 %v68
    %v108 = vunpack.c.l.b16 %v69
    %v109 = vunpack.c.l.b16 %v70
    %v110 = vunpack.c.l.b16 %v71
    %v111 = vunpack.c.l.b16 %v72
    %v112 = vunpack.c.l.b16 %v73
    %v113 = vunpack.c.l.b16 %v74
    %v114 = vunpack.c.l.b16 %v75
    %v115 = vunpack.c.l.b16 %v76
    %v116 = vunpack.c.l.b16 %v77
    %v117 = vunpack.c.l.b16 %v78
    %v118 = vunpack.c.l.b16 %v79
    %v119 = vunpack.c.l.b16 %v80
    %v120 = vunpack.c.l.b16 %v81
    %v121 = vpack.c.b16 %v106, %v105
    %v122 = vpack.c.b16 %v108, %v107
    %v123 = vpack.c.b16 %v110, %v109
    %v124 = vpack.c.b16 %v112, %v111
    %v125 = vpack.c.b16 %v114, %v113
    %v126 = vpack.c.b16 %v116, %v115
    %v127 = vpack.c.b16 %v118, %v117
    %v128 = vpack.c.b16 %v120, %v119
    %137 = vmatprep.subr.bf16.mxu0 0
    %138 = vmatpush1.bf16.msra.mxu0 %v121
    %139 = vmatprep.subr.bf16.mxu0 0
    %140 = vmatpush1.bf16.msra.mxu0 %v122
    %141 = vmatprep.subr.bf16.mxu0 0
    %142 = vmatpush1.bf16.msra.mxu0 %v123
    %143 = vmatprep.subr.bf16.mxu0 0
    %144 = vmatpush1.bf16.msra.mxu0 %v124
    %145 = vmatprep.subr.bf16.mxu0 0
    %146 = vmatpush1.bf16.msra.mxu0 %v125
    %147 = vmatprep.subr.bf16.mxu0 0
    %148 = vmatpush1.bf16.msra.mxu0 %v126
    %149 = vmatprep.subr.bf16.mxu0 0
    %150 = vmatpush1.bf16.msra.mxu0 %v127
    %151 = vmatprep.subr.bf16.mxu0 0
    %152 = vmatpush1.bf16.msra.mxu0 %v128
    %153 = vmatprep.subr.bf16.mxu0 0
    %154 = vmatpush1.bf16.msra.mxu0 0
    %155 = vmatprep.subr.bf16.mxu0 0
    %156 = vmatpush1.bf16.msra.mxu0 0
    %157 = vmatprep.subr.bf16.mxu0 0
    %158 = vmatpush1.bf16.msra.mxu0 0
    %159 = vmatprep.subr.bf16.mxu0 0
    %160 = vmatpush1.bf16.msra.mxu0 0
    %161 = vmatprep.subr.bf16.mxu0 0
    %162 = vmatpush1.bf16.msra.mxu0 0
    %163 = vmatprep.subr.bf16.mxu0 0
    %164 = vmatpush1.bf16.msra.mxu0 0
    %165 = vmatprep.subr.bf16.mxu0 0
    %166 = vmatpush1.bf16.msra.mxu0 0
    %167 = vmatprep.subr.bf16.mxu0 0
    %168 = vmatpush1.bf16.msra.mxu0 0
    %169 = vmatprep.mubr.bf16.mxu0 0
    %170 = vmatmul.mubr.bf16.gmra.mrb[0].mxu0 %v65
    %v171 = vpop.f32.mrb[0].mxu0
    %v172 = vadd.f32 %v87, %v171
    %v173 = vpop.f32.mrb[0].mxu0
    %v174 = vpop.f32.mrb[0].mxu0
    %v175 = vadd.f32 %v87, %v174
    %v176 = vpop.f32.mrb[0].mxu0
    %177 = vdwg.mxu0
    %178 = vst [vmem:[#allocation2] sm:$0xff] %v172
    %179 = vst [vmem:[#allocation2 + $0x8] sm:$0xff] %v175
    // Predicated region
    $region22: #{prenorm_linear.1} parent=1 // pred_check
      _
    $region23: #{prenorm_linear.1} parent=1 // pred_check_branch
      %181 = sbr.rel (0) target = $region25
    $region24: #{prenorm_linear.1} parent=1 // pred_region
      %s183 = ssub.s32 256, 256
      %184 = vsyncadd [#allocation3], %s183
      %s185 = sshll.u32 [#allocation2], 4
      %s186 = int_to_ptr.vmem [resolvable:$true] %s185
      %191 = dma.vmem_to_hbm [thread:$0]  %s186, 256, %s5, [#allocation3], 128, 128, 8
    $region25: #{prenorm_linear.1} parent=1 // pred_fallthru
      _
    // Predicated region
    $region26: #{prenorm_linear.1} parent=1 // pred_check
      _
    $region27: #{prenorm_linear.1} parent=1 // pred_check_branch
      %193 = sbr.rel (0) target = $region29
    $region28: #{prenorm_linear.1} parent=1 // pred_region
      %194 = dma.done [#allocation3], 256
    $region29: #{prenorm_linear.1} parent=1 // pred_fallthru
      _
    %195 = vsyncpa [#allocation3], 1

</llo_original>
